<compile_context>
chip_gen: v7x
topology: tpu7x:2x2x1
jax: 0.10.0
libtpu: 0.0.40
codegen_flags: <defaults>
</compile_context>

<pallas_src>
import functools

import numpy as np
import jax
import jax.numpy as jnp
from jax import lax
from jax.experimental import pallas as pl
from jax.experimental.pallas import tpu as pltpu

K = 15                                   # conv kernel height
PAD = 7                                  # conv padding along H
STRIDE_H = 4                             # stride along H (stride=(4, 1))
NG = -(-K // STRIDE_H)                   # 4 tap groups: k = STRIDE_H * a + r
SC_R = PAD % STRIDE_H                    # shortcut tap: phase 3 ...
SC_A = PAD // STRIDE_H                   # ... row offset 1
EPS = 1e-5                               # BatchNorm eps


def _block2_kernel(x_ref, w1_ref, w2_ref, ws_ref, bn_ref, o_ref, y1col_ref,
                   *, c_in, c_out, h_out, w):
    hw = h_out * w
    bn = bn_ref[...]                                     # (c_out, 8) f32 packed scale/shift

    # ---- conv1: (15,1) stride (4,1) as NG matmuls (contraction STRIDE_H*c_in) ----
    acc = jnp.dot(w1_ref[0], x_ref[:, 0:hw], preferred_element_type=jnp.float32)
    for a in range(1, NG):                               # static offsets a*w
        acc = acc + jnp.dot(w1_ref[a], x_ref[:, a * w:a * w + hw],
                            preferred_element_type=jnp.float32)
    # fused BN1 (conv1 bias folded) + ReLU, cast to the matmul compute dtype
    y1 = jnp.maximum(acc * bn[:, 0:1] + bn[:, 1:2], 0.0).astype(y1col_ref.dtype)

    # ---- conv2 im2col: 15 shifted copies of y1 into the (K*c_out, hw) scratch ----
    # Rows of y1 that fall outside [0, h_out) must contribute zero.  Only the two
    # staircase halo rectangles are zeroed; the valid region is overwritten below.
    halo = min(PAD, h_out) * w
    zeros = jnp.zeros((PAD * c_out, halo), y1col_ref.dtype)
    y1col_ref[0:PAD * c_out, 0:halo] = zeros                        # left halos (k < 7)
    y1col_ref[(PAD + 1) * c_out:K * c_out, hw - halo:hw] = zeros    # right halos (k > 7)
    for k in range(K):
        span = h_out - abs(k - PAD)
        if span <= 0:
            continue                                     # tap entirely in the halo
        dst = max(0, PAD - k) * w
        src = max(0, k - PAD) * w
        y1col_ref[k * c_out:(k + 1) * c_out, dst:dst + span * w] = \
            y1[:, src:src + span * w]

    # ---- conv2: ONE matmul with contraction K*c_out ----
    y2 = jnp.dot(w2_ref[...], y1col_ref[...], preferred_element_type=jnp.float32)

    # ---- shortcut: 1x1 conv stride (4,1) + fused BN2 (read straight off the ref) ----
    xs = x_ref[SC_R * c_in:(SC_R + 1) * c_in, SC_A * w:SC_A * w + hw]
    sc = jnp.dot(ws_ref[...], xs, preferred_element_type=jnp.float32)
    sc = sc * bn[:, 2:3] + bn[:, 3:4]

    # ---- residual add + fused BN3 (conv2 bias folded) + ReLU ----
    o_ref[...] = jnp.maximum((y2 + sc) * bn[:, 4:5] + bn[:, 5:6], 0.0).astype(o_ref.dtype)


@functools.partial(jax.jit, static_argnames=("compute_dtype",))
def block2_forward(x, p, *, compute_dtype=jnp.bfloat16):
    """x: (N, C_in, H, W) float32 (NCHW, as in PyTorch). Returns (N, C_out, H_out, W)."""
    n, c_in, h, w = x.shape
    c_out = p["w1"].shape[0]
    h_out = (h - 1) // STRIDE_H + 1
    hw = h_out * w
    hq = h_out + (NG - 1)                 # rows kept per stride-phase
    h_pad = STRIDE_H * hq

    # --- glue: polyphase (stride-4) split of the padded input, ~1x the size of x ---
    # row (r*c_in + ci), lane (j*w + wc)  <->  x_pad[ci, STRIDE_H*j + r, wc]
    x_pad = jnp.pad(x, ((0, 0), (0, 0), (PAD, h_pad - h - PAD), (0, 0)))
    x_ph = (x_pad.reshape(n, c_in, hq, STRIDE_H, w)
                 .transpose(0, 3, 1, 2, 4)
                 .reshape(n, STRIDE_H * c_in, hq * w)
                 .astype(compute_dtype))

    # --- glue: conv1 weights grouped by a = k // STRIDE_H (tap k=15 zero-padded) ---
    w1 = p["w1"][..., 0]                                              # (c_out, c_in, K)
    w1 = jnp.concatenate(
        [w1, jnp.zeros((c_out, c_in, NG * STRIDE_H - K), w1.dtype)], axis=-1)
    w1_mat = (w1.reshape(c_out, c_in, NG, STRIDE_H)                   # [co, ci, a, r]
                .transpose(2, 0, 3, 1)                                # [a, co, r, ci]
                .reshape(NG, c_out, STRIDE_H * c_in)
                .astype(compute_dtype))

    # --- glue: conv2 weights as one wide-contraction matrix (c_out, K*c_out) ---
    w2_mat = (p["w2"][..., 0].transpose(0, 2, 1)                      # [co, k, ci]
                .reshape(c_out, K * c_out).astype(compute_dtype))
    ws_mat = p["ws"][:, :, 0, 0].astype(compute_dtype)                # (c_out, c_in)

    # --- glue: fold eval-mode BN + conv biases, pack into a single (c_out, 8) input ---
    def fuse(gamma, beta, mean, var, bias):
        s = gamma / jnp.sqrt(var + EPS)
        return s, s * (bias - mean) + beta

    s1, t1 = fuse(p["bn1_gamma"], p["bn1_beta"], p["bn1_mean"], p["bn1_var"], p["b1"])
    ss, ts = fuse(p["bn2_gamma"], p["bn2_beta"], p["bn2_mean"], p["bn2_var"], p["bs"])
    s3, t3 = fuse(p["bn3_gamma"], p["bn3_beta"], p["bn3_mean"], p["bn3_var"], p["b2"])
    zero = jnp.zeros_like(s1)
    bn_pack = jnp.stack([s1, t1, ss, ts, s3, t3, zero, zero], axis=1).astype(jnp.float32)

    kernel = functools.partial(_block2_kernel, c_in=c_in, c_out=c_out, h_out=h_out, w=w)

    # TODO(synk): for very large H*W, add an hw-tile grid axis (overlapped blocks for
    # the conv2 halo) so per-batch blocks fit v7x's 64 MiB VMEM and overlap DMA/compute.
    out = pl.pallas_call(
        kernel,
        out_shape=jax.ShapeDtypeStruct((n, c_out, hw), jnp.float32),
        grid_spec=pltpu.PrefetchScalarGridSpec(
            num_scalar_prefetch=0,
            grid=(n,),
            in_specs=[
                pl.BlockSpec((None, STRIDE_H * c_in, hq * w), lambda i: (i, 0, 0)),  # x (polyphase)
                pl.BlockSpec((NG, c_out, STRIDE_H * c_in), lambda i: (0, 0, 0)),     # conv1 W
                pl.BlockSpec((c_out, K * c_out), lambda i: (0, 0)),                  # conv2 W
                pl.BlockSpec((c_out, c_in), lambda i: (0, 0)),                       # shortcut W
                pl.BlockSpec((c_out, 8), lambda i: (0, 0)),                          # packed BN
            ],
            out_specs=pl.BlockSpec((None, c_out, hw), lambda i: (i, 0, 0)),
            scratch_shapes=[pltpu.VMEM((K * c_out, hw), compute_dtype)],             # conv2 im2col
        ),
        compiler_params=pltpu.CompilerParams(
            dimension_semantics=("parallel",),        # batch axis -> both TCs on v7x
            vmem_limit_bytes=64 * 1024 * 1024,
        ),
    )(x_ph, w1_mat, w2_mat, ws_mat, bn_pack)

    return out.reshape(n, c_out, h_out, w)


def init_params(key, c_in, c_out):
    ks = jax.random.split(key, 20)

    def nrm(k, shape, scale=0.1):
        return scale * jax.random.normal(k, shape, jnp.float32)

    p = {
        "w1": nrm(ks[0], (c_out, c_in, K, 1)),
        "b1": nrm(ks[1], (c_out,)),
        "w2": nrm(ks[2], (c_out, c_out, K, 1)),
        "b2": nrm(ks[3], (c_out,)),
        "ws": nrm(ks[4], (c_out, c_in, 1, 1)),
        "bs": nrm(ks[5], (c_out,)),
    }
    for i, name in enumerate(["bn1", "bn2", "bn3"]):
        base = 6 + 4 * i
        p[name + "_gamma"] = 1.0 + nrm(ks[base + 0], (c_out,))
        p[name + "_beta"] = nrm(ks[base + 1], (c_out,))
        p[name + "_mean"] = nrm(ks[base + 2], (c_out,))
        p[name + "_var"] = 0.5 + jax.random.uniform(ks[base + 3], (c_out,), jnp.float32)
    return p


def reference(x, p):
    """Pure-JAX reference matching PyTorch Block2 (eval-mode BatchNorm)."""
    dn = ("NCHW", "OIHW", "NCHW")

    def bn(z, g, b, m, v):
        rs = lambda a: a[None, :, None, None]
        return rs(g) * (z - rs(m)) / jnp.sqrt(rs(v) + EPS) + rs(b)

    y = lax.conv_general_dilated(x, p["w1"], (STRIDE_H, 1), ((PAD, PAD), (0, 0)),
                                 dimension_numbers=dn) + p["b1"][None, :, None, None]
    y = jnp.maximum(bn(y, p["bn1_gamma"], p["bn1_beta"], p["bn1_mean"], p["bn1_var"]), 0.0)
    y = lax.conv_general_dilated(y, p["w2"], (1, 1), ((PAD, PAD), (0, 0)),
                                 dimension_numbers=dn) + p["b2"][None, :, None, None]
    s = lax.conv_general_dilated(x, p["ws"], (STRIDE_H, 1), ((0, 0), (0, 0)),
                                 dimension_numbers=dn) + p["bs"][None, :, None, None]
    s = bn(s, p["bn2_gamma"], p["bn2_beta"], p["bn2_mean"], p["bn2_var"])
    return jnp.maximum(bn(y + s, p["bn3_gamma"], p["bn3_beta"], p["bn3_mean"], p["bn3_var"]), 0.0)


if __name__ == "__main__":
    N, C_IN, C_OUT, H, W = 2, 4, 16, 16, 16
    key = jax.random.PRNGKey(0)
    kx, kp = jax.random.split(key)
    x = jax.random.normal(kx, (N, C_IN, H, W), jnp.float32)
    params = init_params(kp, C_IN, C_OUT)

    ref = jax.block_until_ready(reference(x, params))

    # algorithmic check of the kernel with f32 matmul operands
    out_f32 = jax.block_until_ready(block2_forward(x, params, compute_dtype=jnp.float32))
    np.testing.assert_allclose(np.asarray(out_f32), np.asarray(ref), rtol=1e-2, atol=1e-2)

    # default fast path: bf16 matmul operands, f32 accumulation / BN epilogue
    out = jax.block_until_ready(block2_forward(x, params))
    np.testing.assert_allclose(np.asarray(out), np.asarray(ref), rtol=3e-2, atol=3e-2)

    print("KERNEL_OK")
</pallas_src>

<mosaic_0001>
module attributes {stable_mosaic.version = 11 : i64} {
  func.func @_block2_kernel(%arg0: i32, %arg1: memref<1x16x112xf32, #tpu.memory_space<vmem>>, %arg2: memref<4x16x16xf32, #tpu.memory_space<vmem>>, %arg3: memref<16x240xf32, #tpu.memory_space<vmem>>, %arg4: memref<16x4xf32, #tpu.memory_space<vmem>>, %arg5: memref<16x8xf32, #tpu.memory_space<vmem>>, %arg6: memref<1x16x64xf32, #tpu.memory_space<vmem>>, %arg7: memref<240x64xf32, #tpu.memory_space<vmem>>) attributes {dimension_semantics = [#tpu.dimension_semantics<parallel>], iteration_bounds = array<i64: 2>, scalar_prefetch = 0 : i64, scratch_operands = 1 : i64, tpu.core_type = #tpu.core_type<tc>, window_params = [{transform_indices = @transform_0, window_bounds = array<i64: 1, 16, 112>}, {pipeline_mode = #tpu.pipeline_mode<synchronous>, transform_indices = @transform_1, window_bounds = array<i64: 4, 16, 16>}, {pipeline_mode = #tpu.pipeline_mode<synchronous>, transform_indices = @transform_2, window_bounds = array<i64: 16, 240>}, {pipeline_mode = #tpu.pipeline_mode<synchronous>, transform_indices = @transform_3, window_bounds = array<i64: 16, 4>}, {pipeline_mode = #tpu.pipeline_mode<synchronous>, transform_indices = @transform_4, window_bounds = array<i64: 16, 8>}, {transform_indices = @transform_5, window_bounds = array<i64: 1, 16, 64>}]} {
    %c0 = arith.constant 0 : index
    %c0_0 = arith.constant 0 : index
    %0 = vector.load %arg5[%c0, %c0_0] : memref<16x8xf32, #tpu.memory_space<vmem>>, vector<16x8xf32>
    %c0_1 = arith.constant 0 : index
    %c0_2 = arith.constant 0 : index
    %c0_3 = arith.constant 0 : index
    %1 = vector.load %arg2[%c0_1, %c0_2, %c0_3] : memref<4x16x16xf32, #tpu.memory_space<vmem>>, vector<1x16x16xf32>
    %2 = vector.shape_cast %1 : vector<1x16x16xf32> to vector<16x16xf32>
    %c0_4 = arith.constant 0 : index
    %c0_5 = arith.constant 0 : index
    %c0_6 = arith.constant 0 : index
    %3 = vector.load %arg1[%c0_4, %c0_5, %c0_6] : memref<1x16x112xf32, #tpu.memory_space<vmem>>, vector<1x16x64xf32>
    %4 = vector.shape_cast %3 : vector<1x16x64xf32> to vector<16x64xf32>
    %cst = arith.constant dense<0.000000e+00> : vector<16x64xf32>
    %5 = tpu.matmul %2, %4, %cst {dimension_numbers = #tpu.dot_dimension_numbers<[1], [0], [0], [1], [0, 0, 1, 1], [], []>} : vector<16x16xf32>, vector<16x64xf32>, vector<16x64xf32> -> vector<16x64xf32>
    %c1 = arith.constant 1 : index
    %c0_7 = arith.constant 0 : index
    %c0_8 = arith.constant 0 : index
    %6 = vector.load %arg2[%c1, %c0_7, %c0_8] : memref<4x16x16xf32, #tpu.memory_space<vmem>>, vector<1x16x16xf32>
    %7 = vector.shape_cast %6 : vector<1x16x16xf32> to vector<16x16xf32>
    %c0_9 = arith.constant 0 : index
    %c0_10 = arith.constant 0 : index
    %c16 = arith.constant 16 : index
    %8 = vector.load %arg1[%c0_9, %c0_10, %c16] : memref<1x16x112xf32, #tpu.memory_space<vmem>>, vector<1x16x64xf32>
    %9 = vector.shape_cast %8 : vector<1x16x64xf32> to vector<16x64xf32>
    %cst_11 = arith.constant dense<0.000000e+00> : vector<16x64xf32>
    %10 = tpu.matmul %7, %9, %cst_11 {dimension_numbers = #tpu.dot_dimension_numbers<[1], [0], [0], [1], [0, 0, 1, 1], [], []>} : vector<16x16xf32>, vector<16x64xf32>, vector<16x64xf32> -> vector<16x64xf32>
    %11 = arith.addf %5, %10 : vector<16x64xf32>
    %c2 = arith.constant 2 : index
    %c0_12 = arith.constant 0 : index
    %c0_13 = arith.constant 0 : index
    %12 = vector.load %arg2[%c2, %c0_12, %c0_13] : memref<4x16x16xf32, #tpu.memory_space<vmem>>, vector<1x16x16xf32>
    %13 = vector.shape_cast %12 : vector<1x16x16xf32> to vector<16x16xf32>
    %c0_14 = arith.constant 0 : index
    %c0_15 = arith.constant 0 : index
    %c32 = arith.constant 32 : index
    %14 = vector.load %arg1[%c0_14, %c0_15, %c32] : memref<1x16x112xf32, #tpu.memory_space<vmem>>, vector<1x16x64xf32>
    %15 = vector.shape_cast %14 : vector<1x16x64xf32> to vector<16x64xf32>
    %cst_16 = arith.constant dense<0.000000e+00> : vector<16x64xf32>
    %16 = tpu.matmul %13, %15, %cst_16 {dimension_numbers = #tpu.dot_dimension_numbers<[1], [0], [0], [1], [0, 0, 1, 1], [], []>} : vector<16x16xf32>, vector<16x64xf32>, vector<16x64xf32> -> vector<16x64xf32>
    %17 = arith.addf %11, %16 : vector<16x64xf32>
    %c3 = arith.constant 3 : index
    %c0_17 = arith.constant 0 : index
    %c0_18 = arith.constant 0 : index
    %18 = vector.load %arg2[%c3, %c0_17, %c0_18] : memref<4x16x16xf32, #tpu.memory_space<vmem>>, vector<1x16x16xf32>
    %19 = vector.shape_cast %18 : vector<1x16x16xf32> to vector<16x16xf32>
    %c0_19 = arith.constant 0 : index
    %c0_20 = arith.constant 0 : index
    %c48 = arith.constant 48 : index
    %20 = vector.load %arg1[%c0_19, %c0_20, %c48] : memref<1x16x112xf32, #tpu.memory_space<vmem>>, vector<1x16x64xf32>
    %21 = vector.shape_cast %20 : vector<1x16x64xf32> to vector<16x64xf32>
    %cst_21 = arith.constant dense<0.000000e+00> : vector<16x64xf32>
    %22 = tpu.matmul %19, %21, %cst_21 {dimension_numbers = #tpu.dot_dimension_numbers<[1], [0], [0], [1], [0, 0, 1, 1], [], []>} : vector<16x16xf32>, vector<16x64xf32>, vector<16x64xf32> -> vector<16x64xf32>
    %23 = arith.addf %17, %22 : vector<16x64xf32>
    %24 = vector.extract_strided_slice %0 {offsets = [0, 0], sizes = [16, 1], strides = [1, 1]} : vector<16x8xf32> to vector<16x1xf32>
    %25 = vector.broadcast %24 : vector<16x1xf32> to vector<16x64xf32>
    %26 = arith.mulf %23, %25 : vector<16x64xf32>
    %27 = vector.extract_strided_slice %0 {offsets = [0, 1], sizes = [16, 1], strides = [1, 1]} : vector<16x8xf32> to vector<16x1xf32>
    %28 = vector.broadcast %27 : vector<16x1xf32> to vector<16x64xf32>
    %29 = arith.addf %26, %28 : vector<16x64xf32>
    %cst_22 = arith.constant 0.000000e+00 : f32
    %30 = vector.broadcast %cst_22 : f32 to vector<16x64xf32>
    %31 = arith.maximumf %29, %30 : vector<16x64xf32>
    %cst_23 = arith.constant 0.000000e+00 : f32
    %32 = vector.broadcast %cst_23 : f32 to vector<112x64xf32>
    %c0_24 = arith.constant 0 : index
    %c0_25 = arith.constant 0 : index
    %33 = vector.load %arg7[%c0_24, %c0_25] : memref<240x64xf32, #tpu.memory_space<vmem>>, vector<112x64xf32>
    tpu.vector_store %arg7[%c0_24, %c0_25], %32 {strides = array<i32>} : memref<240x64xf32, #tpu.memory_space<vmem>>, vector<112x64xf32>,
    %c128 = arith.constant 128 : index
    %c0_26 = arith.constant 0 : index
    %34 = vector.load %arg7[%c128, %c0_26] : memref<240x64xf32, #tpu.memory_space<vmem>>, vector<112x64xf32>
    tpu.vector_store %arg7[%c128, %c0_26], %32 {strides = array<i32>} : memref<240x64xf32, #tpu.memory_space<vmem>>, vector<112x64xf32>,
    %35 = vector.extract_strided_slice %31 {offsets = [0, 0], sizes = [16, 16], strides = [1, 1]} : vector<16x64xf32> to vector<16x16xf32>
    %c64 = arith.constant 64 : index
    %c48_27 = arith.constant 48 : index
    %36 = vector.load %arg7[%c64, %c48_27] : memref<240x64xf32, #tpu.memory_space<vmem>>, vector<16x16xf32>
    tpu.vector_store %arg7[%c64, %c48_27], %35 {strides = array<i32>} : memref<240x64xf32, #tpu.memory_space<vmem>>, vector<16x16xf32>,
    %37 = vector.extract_strided_slice %31 {offsets = [0, 0], sizes = [16, 32], strides = [1, 1]} : vector<16x64xf32> to vector<16x32xf32>
    %c80 = arith.constant 80 : index
    %c32_28 = arith.constant 32 : index
    %38 = vector.load %arg7[%c80, %c32_28] : memref<240x64xf32, #tpu.memory_space<vmem>>, vector<16x32xf32>
    tpu.vector_store %arg7[%c80, %c32_28], %37 {strides = array<i32>} : memref<240x64xf32, #tpu.memory_space<vmem>>, vector<16x32xf32>,
    %39 = vector.extract_strided_slice %31 {offsets = [0, 0], sizes = [16, 48], strides = [1, 1]} : vector<16x64xf32> to vector<16x48xf32>
    %c96 = arith.constant 96 : index
    %c16_29 = arith.constant 16 : index
    %40 = vector.load %arg7[%c96, %c16_29] : memref<240x64xf32, #tpu.memory_space<vmem>>, vector<16x48xf32>
    tpu.vector_store %arg7[%c96, %c16_29], %39 {strides = array<i32>} : memref<240x64xf32, #tpu.memory_space<vmem>>, vector<16x48xf32>,
    %c112 = arith.constant 112 : index
    %c0_30 = arith.constant 0 : index
    %41 = vector.load %arg7[%c112, %c0_30] : memref<240x64xf32, #tpu.memory_space<vmem>>, vector<16x64xf32>
    tpu.vector_store %arg7[%c112, %c0_30], %31 {strides = array<i32>} : memref<240x64xf32, #tpu.memory_space<vmem>>, vector<16x64xf32>,
    %42 = vector.extract_strided_slice %31 {offsets = [0, 16], sizes = [16, 48], strides = [1, 1]} : vector<16x64xf32> to vector<16x48xf32>
    %c128_31 = arith.constant 128 : index
    %c0_32 = arith.constant 0 : index
    %43 = vector.load %arg7[%c128_31, %c0_32] : memref<240x64xf32, #tpu.memory_space<vmem>>, vector<16x48xf32>
    tpu.vector_store %arg7[%c128_31, %c0_32], %42 {strides = array<i32>} : memref<240x64xf32, #tpu.memory_space<vmem>>, vector<16x48xf32>,
    %44 = vector.extract_strided_slice %31 {offsets = [0, 32], sizes = [16, 32], strides = [1, 1]} : vector<16x64xf32> to vector<16x32xf32>
    %c144 = arith.constant 144 : index
    %c0_33 = arith.constant 0 : index
    %45 = vector.load %arg7[%c144, %c0_33] : memref<240x64xf32, #tpu.memory_space<vmem>>, vector<16x32xf32>
    tpu.vector_store %arg7[%c144, %c0_33], %44 {strides = array<i32>} : memref<240x64xf32, #tpu.memory_space<vmem>>, vector<16x32xf32>,
    %46 = vector.extract_strided_slice %31 {offsets = [0, 48], sizes = [16, 16], strides = [1, 1]} : vector<16x64xf32> to vector<16x16xf32>
    %c160 = arith.constant 160 : index
    %c0_34 = arith.constant 0 : index
    %47 = vector.load %arg7[%c160, %c0_34] : memref<240x64xf32, #tpu.memory_space<vmem>>, vector<16x16xf32>
    tpu.vector_store %arg7[%c160, %c0_34], %46 {strides = array<i32>} : memref<240x64xf32, #tpu.memory_space<vmem>>, vector<16x16xf32>,
    %c0_35 = arith.constant 0 : index
    %c0_36 = arith.constant 0 : index
    %48 = vector.load %arg3[%c0_35, %c0_36] : memref<16x240xf32, #tpu.memory_space<vmem>>, vector<16x240xf32>
    %c0_37 = arith.constant 0 : index
    %c0_38 = arith.constant 0 : index
    %49 = vector.load %arg7[%c0_37, %c0_38] : memref<240x64xf32, #tpu.memory_space<vmem>>, vector<240x64xf32>
    %cst_39 = arith.constant dense<0.000000e+00> : vector<16x64xf32>
    %50 = tpu.matmul %48, %49, %cst_39 {dimension_numbers = #tpu.dot_dimension_numbers<[1], [0], [0], [1], [0, 0, 1, 1], [], []>} : vector<16x240xf32>, vector<240x64xf32>, vector<16x64xf32> -> vector<16x64xf32>
    %c0_40 = arith.constant 0 : index
    %c12 = arith.constant 12 : index
    %c16_41 = arith.constant 16 : index
    %51 = vector.load %arg1[%c0_40, %c12, %c16_41] : memref<1x16x112xf32, #tpu.memory_space<vmem>>, vector<1x4x64xf32>
    %52 = vector.shape_cast %51 : vector<1x4x64xf32> to vector<4x64xf32>
    %c0_42 = arith.constant 0 : index
    %c0_43 = arith.constant 0 : index
    %53 = vector.load %arg4[%c0_42, %c0_43] : memref<16x4xf32, #tpu.memory_space<vmem>>, vector<16x4xf32>
    %cst_44 = arith.constant dense<0.000000e+00> : vector<16x64xf32>
    %54 = tpu.matmul %53, %52, %cst_44 {dimension_numbers = #tpu.dot_dimension_numbers<[1], [0], [0], [1], [0, 0, 1, 1], [], []>} : vector<16x4xf32>, vector<4x64xf32>, vector<16x64xf32> -> vector<16x64xf32>
    %55 = vector.extract_strided_slice %0 {offsets = [0, 2], sizes = [16, 1], strides = [1, 1]} : vector<16x8xf32> to vector<16x1xf32>
    %56 = vector.broadcast %55 : vector<16x1xf32> to vector<16x64xf32>
    %57 = arith.mulf %54, %56 : vector<16x64xf32>
    %58 = vector.extract_strided_slice %0 {offsets = [0, 3], sizes = [16, 1], strides = [1, 1]} : vector<16x8xf32> to vector<16x1xf32>
    %59 = vector.broadcast %58 : vector<16x1xf32> to vector<16x64xf32>
    %60 = arith.addf %57, %59 : vector<16x64xf32>
    %61 = arith.addf %50, %60 : vector<16x64xf32>
    %62 = vector.extract_strided_slice %0 {offsets = [0, 4], sizes = [16, 1], strides = [1, 1]} : vector<16x8xf32> to vector<16x1xf32>
    %63 = vector.broadcast %62 : vector<16x1xf32> to vector<16x64xf32>
    %64 = arith.mulf %61, %63 : vector<16x64xf32>
    %65 = vector.extract_strided_slice %0 {offsets = [0, 5], sizes = [16, 1], strides = [1, 1]} : vector<16x8xf32> to vector<16x1xf32>
    %66 = vector.broadcast %65 : vector<16x1xf32> to vector<16x64xf32>
    %67 = arith.addf %64, %66 : vector<16x64xf32>
    %cst_45 = arith.constant 0.000000e+00 : f32
    %68 = vector.broadcast %cst_45 : f32 to vector<16x64xf32>
    %69 = arith.maximumf %67, %68 : vector<16x64xf32>
    %c0_46 = arith.constant 0 : index
    %c0_47 = arith.constant 0 : index
    %c0_48 = arith.constant 0 : index
    %70 = vector.load %arg6[%c0_46, %c0_47, %c0_48] : memref<1x16x64xf32, #tpu.memory_space<vmem>>, vector<1x16x64xf32>
    %71 = vector.shape_cast %70 : vector<1x16x64xf32> to vector<16x64xf32>
    %72 = vector.shape_cast %69 : vector<16x64xf32> to vector<1x16x64xf32>
    tpu.vector_store %arg6[%c0_46, %c0_47, %c0_48], %72 {strides = array<i32>} : memref<1x16x64xf32, #tpu.memory_space<vmem>>, vector<1x16x64xf32>,
    return
  }
  func.func @transform_0(%arg0: i32) -> (i32, i32, i32) {
    %c0_i32 = arith.constant 0 : i32
    %c0_i32_0 = arith.constant 0 : i32
    %c0_i32_1 = arith.constant 0 : i32
    return %arg0, %c0_i32, %c0_i32_0 : i32, i32, i32
  }
  func.func @transform_1(%arg0: i32) -> (i32, i32, i32) {
    %c0_i32 = arith.constant 0 : i32
    %c0_i32_0 = arith.constant 0 : i32
    %c0_i32_1 = arith.constant 0 : i32
    %c0_i32_2 = arith.constant 0 : i32
    return %c0_i32, %c0_i32_0, %c0_i32_1 : i32, i32, i32
  }
  func.func @transform_2(%arg0: i32) -> (i32, i32) {
    %c0_i32 = arith.constant 0 : i32
    %c0_i32_0 = arith.constant 0 : i32
    %c0_i32_1 = arith.constant 0 : i32
    return %c0_i32, %c0_i32_0 : i32, i32
  }
  func.func @transform_3(%arg0: i32) -> (i32, i32) {
    %c0_i32 = arith.constant 0 : i32
    %c0_i32_0 = arith.constant 0 : i32
    %c0_i32_1 = arith.constant 0 : i32
    return %c0_i32, %c0_i32_0 : i32, i32
  }
  func.func @transform_4(%arg0: i32) -> (i32, i32) {
    %c0_i32 = arith.constant 0 : i32
    %c0_i32_0 = arith.constant 0 : i32
    %c0_i32_1 = arith.constant 0 : i32
    return %c0_i32, %c0_i32_0 : i32, i32
  }
  func.func @transform_5(%arg0: i32) -> (i32, i32, i32) {
    %c0_i32 = arith.constant 0 : i32
    %c0_i32_0 = arith.constant 0 : i32
    %c0_i32_1 = arith.constant 0 : i32
    return %arg0, %c0_i32, %c0_i32_0 : i32, i32, i32
  }
}

</mosaic_0001>

<llo_original>
// kernel: block2_forward.1
$region0: #{block2_forward.1}
  #allocation0 [shape = 'u32[]', space=smem, size = 0x4, offset = 0x4, fixed_abs, tag = 'smem constant byte address 0x4 - core index']
  #allocation1 [shape = 'u32[144,128]{1,0:T(1,128)}', space=vmem, size = 0x12000, scoped, tag = 'internal scratch']
  #allocation2 [shape = 'f32[240,64]{1,0:T(8,128)}', space=vmem, size = 0x1e000, scoped, tag = 'scratch operand']
  %s0 = inlined_call_operand.hbm [shape: f32[2,16,112], index: 0, kind: input, shape index: {}]
  %s1 = inlined_call_operand.hbm [shape: f32[4,16,16], index: 1, kind: input, shape index: {}]
  %s2 = inlined_call_operand.hbm [shape: f32[16,240], index: 2, kind: input, shape index: {}]
  %s3 = inlined_call_operand.hbm [shape: f32[16,4], index: 3, kind: input, shape index: {}]
  %s4 = inlined_call_operand.hbm [shape: f32[16,8], index: 4, kind: input, shape index: {}]
  %s5 = inlined_call_operand.hbm [shape: f32[2,16,64], index: 5, kind: output, shape index: {}]
  %s6 = sld [smem:[#allocation0]]
  $region73: #{block2_forward.1} parent=0
    _
  %s8 = ssub.s32 1, %s6
  %s9 = scalar_select 0, %s8, %s6
  $region1: #{block2_forward.1} parent=0
    #allocation3 [shape = 'u8[16384]{0}', space=vmem, size = 0x4000, scoped, tag = 'input window, operand 0']
    #allocation4 [shape = 's32[2]{0}', space=sflag, size = 0x8, scoped, tag = 'scoped memory for block2_forward.1']
    #allocation5 [shape = 's32[2]{0}', space=sflag, size = 0x8, scoped, tag = 'scoped memory for block2_forward.1']
    #allocation6 [shape = 'u8[32768]{0}', space=vmem, size = 0x8000, scoped, tag = 'input window, operand 1, single buffered']
    #allocation7 [shape = 's32[1]{0}', space=sflag, size = 0x4, scoped, tag = 'scoped memory for block2_forward.1']
    #allocation8 [shape = 'u8[16384]{0}', space=vmem, size = 0x4000, scoped, tag = 'input window, operand 2, single buffered']
    #allocation9 [shape = 'u8[8192]{0}', space=vmem, size = 0x2000, scoped, tag = 'input window, operand 3, single buffered']
    #allocation10 [shape = 's32[1]{0}', space=sflag, size = 0x4, scoped, tag = 'scoped memory for block2_forward.1']
    #allocation11 [shape = 'u8[8192]{0}', space=vmem, size = 0x2000, scoped, tag = 'input window, operand 4, single buffered']
    #allocation12 [shape = 'u8[16384]{0}', space=vmem, size = 0x4000, scoped, tag = 'output window, operand 0']
    %10 = vsyncpa [#allocation4], 0
    %s11 = scalar_lea.sflag [#allocation4], 1
    %12 = vsyncpa %s11, 0
    %13 = vsyncpa [#allocation7], 0
    %14 = vsyncpa [#allocation10], 0
    %15 = vsyncpa [#allocation5], 0
    %s16 = scalar_lea.sflag [#allocation5], 1
    %17 = vsyncpa %s16, 0
    loop: start=0, step=1, limit=4
    $region2: #{block2_forward.1} parent=1 // loop_pre_header
      _
    $region3: #{block2_forward.1} parent=1 // loop_header
      %s19 = sphi 0, %s23
      %p20 = scmp.ge.s32.totalorder %s19, 4
      %s29 = sphi 0, %s31
      %s32 = sphi 0, %s29
      %s33 = sphi 0, %s32
      %s49 = sphi 0, %s33
      %s53 = sphi 0, %s53
      %s55 = sphi 0, %s53
      %s56 = sphi 0, %s55
      %s70 = sphi 0, %s56
      %s74 = sphi 0, %s74
      %s76 = sphi 0, %s74
      %s77 = sphi 0, %s76
      %s91 = sphi 0, %s77
      %s95 = sphi 0, %s95
      %s97 = sphi 0, %s95
      %s98 = sphi 0, %s97
      %s112 = sphi 0, %s98
      %s116 = sphi 0, %s116
      %s118 = sphi 0, %s116
      %s119 = sphi 0, %s118
      %s133 = sphi 0, %s119
      %s139 = sphi 0, %s141
      %s142 = sphi 0, %s139
      %s143 = sphi 0, %s142
      %s159 = sphi 0, %s143
    $region4: #{block2_forward.1} parent=1 // loop_header_branch
      %22 = sbr.rel (%p20) target = $region8
    $region5: #{block2_forward.1} parent=1 // loop_body
      %s24 = ssub.s32 %s19, 1
      %s25 = ssub.s32 %s19, 2
      %s26 = sadd.s32 %s19, 1
      %s27 = ssub.s32 %s19, %s26
      %p28 = scmp.eq.s32.totalorder %s27, 0
      %s30 = sadd.s32 %s29, 1
      %s31 = scalar_select %p28, %s29, %s30
      %p34 = pneg %p28
      %p35 = scmp.eq.s32.totalorder %s19, 1
      %p36 = por %p34, %p35
      %p37 = scmp.ne.s32.totalorder %s29, %s32
      %p38 = scmp.eq.s32.totalorder %s19, 0
      %p39 = por %p37, %p38
      %p40 = scmp.ne.s32.totalorder %s29, %s32
      %p41 = scmp.eq.s32.totalorder %s24, 1
      %p42 = por %p40, %p41
      %p43 = scmp.ne.s32.totalorder %s32, %s33
      %p44 = scmp.eq.s32.totalorder %s24, 0
      %p45 = por %p43, %p44
      %p46 = scmp.ne.s32.totalorder %s32, %s33
      %p47 = scmp.eq.s32.totalorder %s25, 1
      %p48 = por %p46, %p47
      %p50 = scmp.ne.s32.totalorder %s33, %s49
      %p51 = scmp.eq.s32.totalorder %s25, 0
      %p52 = por %p50, %p51
      %s54 = sadd.s32 %s53, 1
      %p57 = scmp.eq.s32.totalorder %s19, 1
      %p58 = scmp.ne.s32.totalorder %s53, %s55
      %p59 = scmp.eq.s32.totalorder %s19, 0
      %p60 = por %p58, %p59
      %p61 = scmp.ne.s32.totalorder %s53, %s55
      %p62 = scmp.eq.s32.totalorder %s24, 1
      %p63 = por %p61, %p62
      %p64 = scmp.ne.s32.totalorder %s55, %s56
      %p65 = scmp.eq.s32.totalorder %s24, 0
      %p66 = por %p64, %p65
      %p67 = scmp.ne.s32.totalorder %s55, %s56
      %p68 = scmp.eq.s32.totalorder %s25, 1
      %p69 = por %p67, %p68
      %p71 = scmp.ne.s32.totalorder %s56, %s70
      %p72 = scmp.eq.s32.totalorder %s25, 0
      %p73 = por %p71, %p72
      %s75 = sadd.s32 %s74, 1
      %p78 = scmp.eq.s32.totalorder %s19, 1
      %p79 = scmp.ne.s32.totalorder %s74, %s76
      %p80 = scmp.eq.s32.totalorder %s19, 0
      %p81 = por %p79, %p80
      %p82 = scmp.ne.s32.totalorder %s74, %s76
      %p83 = scmp.eq.s32.totalorder %s24, 1
      %p84 = por %p82, %p83
      %p85 = scmp.ne.s32.totalorder %s76, %s77
      %p86 = scmp.eq.s32.totalorder %s24, 0
      %p87 = por %p85, %p86
      %p88 = scmp.ne.s32.totalorder %s76, %s77
      %p89 = scmp.eq.s32.totalorder %s25, 1
      %p90 = por %p88, %p89
      %p92 = scmp.ne.s32.totalorder %s77, %s91
      %p93 = scmp.eq.s32.totalorder %s25, 0
      %p94 = por %p92, %p93
      %s96 = sadd.s32 %s95, 1
      %p99 = scmp.eq.s32.totalorder %s19, 1
      %p100 = scmp.ne.s32.totalorder %s95, %s97
      %p101 = scmp.eq.s32.totalorder %s19, 0
      %p102 = por %p100, %p101
      %p103 = scmp.ne.s32.totalorder %s95, %s97
      %p104 = scmp.eq.s32.totalorder %s24, 1
      %p105 = por %p103, %p104
      %p106 = scmp.ne.s32.totalorder %s97, %s98
      %p107 = scmp.eq.s32.totalorder %s24, 0
      %p108 = por %p106, %p107
      %p109 = scmp.ne.s32.totalorder %s97, %s98
      %p110 = scmp.eq.s32.totalorder %s25, 1
      %p111 = por %p109, %p110
      %p113 = scmp.ne.s32.totalorder %s98, %s112
      %p114 = scmp.eq.s32.totalorder %s25, 0
      %p115 = por %p113, %p114
      %s117 = sadd.s32 %s116, 1
      %p120 = scmp.eq.s32.totalorder %s19, 1
      %p121 = scmp.ne.s32.totalorder %s116, %s118
      %p122 = scmp.eq.s32.totalorder %s19, 0
      %p123 = por %p121, %p122
      %p124 = scmp.ne.s32.totalorder %s116, %s118
      %p125 = scmp.eq.s32.totalorder %s24, 1
      %p126 = por %p124, %p125
      %p127 = scmp.ne.s32.totalorder %s118, %s119
      %p128 = scmp.eq.s32.totalorder %s24, 0
      %p129 = por %p127, %p128
      %p130 = scmp.ne.s32.totalorder %s118, %s119
      %p131 = scmp.eq.s32.totalorder %s25, 1
      %p132 = por %p130, %p131
      %p134 = scmp.ne.s32.totalorder %s119, %s133
      %p135 = scmp.eq.s32.totalorder %s25, 0
      %p136 = por %p134, %p135
      %s137 = ssub.s32 %s19, %s26
      %p138 = scmp.eq.s32.totalorder %s137, 0
      %s140 = sadd.s32 %s139, 1
      %s141 = scalar_select %p138, %s139, %s140
      %p144 = pneg %p138
      %p145 = scmp.eq.s32.totalorder %s19, 1
      %p146 = por %p144, %p145
      %p147 = scmp.ne.s32.totalorder %s139, %s142
      %p148 = scmp.eq.s32.totalorder %s19, 0
      %p149 = por %p147, %p148
      %p150 = scmp.ne.s32.totalorder %s139, %s142
      %p151 = scmp.eq.s32.totalorder %s24, 1
      %p152 = por %p150, %p151
      %p153 = scmp.ne.s32.totalorder %s142, %s143
      %p154 = scmp.eq.s32.totalorder %s24, 0
      %p155 = por %p153, %p154
      %p156 = scmp.ne.s32.totalorder %s142, %s143
      %p157 = scmp.eq.s32.totalorder %s25, 1
      %p158 = por %p156, %p157
      %p160 = scmp.ne.s32.totalorder %s143, %s159
      %p161 = scmp.eq.s32.totalorder %s25, 0
      %p162 = por %p160, %p161
      %p163 = scmp.le.s32.totalorder 1, %s19
      %p164 = scmp.lt.s32.totalorder %s19, 3
      %p165 = pnand %p163, %p164
      %p166 = pneg %p165
      // Predicated region
      $region9: #{block2_forward.1} parent=5 // pred_check
        _
      $region10: #{block2_forward.1} parent=5 // pred_check_branch
        %168 = sbr.rel (%p165) target = $region12
      $region11: #{block2_forward.1} parent=5 // pred_region
        %s169 = ssub.s32 %s19, 1
        // Predicated region
        $region13: #{block2_forward.1} parent=11 // pred_check
          %p170 = pneg %p66
        $region14: #{block2_forward.1} parent=11 // pred_check_branch
          %172 = sbr.rel (%p170) target = $region16
        $region15: #{block2_forward.1} parent=11 // pred_region
          %s174 = ssub.s32 1024, 1024
          %175 = vsyncadd [#allocation7], %s174
          %s176 = sshll.u32 [#allocation6], 4
          %s177 = int_to_ptr.vmem [resolvable:$true] %s176
          %182 = dma.hbm_to_vmem [thread:$0]  %s1, 1024, %s177, [#allocation7], 128, 128, 8
        $region16: #{block2_forward.1} parent=11 // pred_fallthru
          _
        // Predicated region
        $region17: #{block2_forward.1} parent=11 // pred_check
          %p183 = pneg %p87
        $region18: #{block2_forward.1} parent=11 // pred_check_branch
          %185 = sbr.rel (%p183) target = $region20
        $region19: #{block2_forward.1} parent=11 // pred_region
          %s187 = ssub.s32 512, 512
          %188 = vsyncadd [#allocation7], %s187
          %s189 = sshll.u32 [#allocation8], 4
          %s190 = int_to_ptr.vmem [resolvable:$true] %s189
          %195 = dma.hbm_to_vmem [thread:$0]  %s2, 512, %s190, [#allocation7], 256, 256, 16
        $region20: #{block2_forward.1} parent=11 // pred_fallthru
          _
        // Predicated region
        $region21: #{block2_forward.1} parent=11 // pred_check
          %p196 = pneg %p108
        $region22: #{block2_forward.1} parent=11 // pred_check_branch
          %198 = sbr.rel (%p196) target = $region24
        $region23: #{block2_forward.1} parent=11 // pred_region
          %s200 = ssub.s32 256, 256
          %201 = vsyncadd [#allocation10], %s200
          %s202 = sshll.u32 [#allocation9], 4
          %s203 = int_to_ptr.vmem [resolvable:$true] %s202
          %208 = dma.hbm_to_vmem [thread:$0]  %s3, 256, %s203, [#allocation10], 128, 128, 8
        $region24: #{block2_forward.1} parent=11 // pred_fallthru
          _
        // Predicated region
        $region25: #{block2_forward.1} parent=11 // pred_check
          %p209 = pneg %p129
        $region26: #{block2_forward.1} parent=11 // pred_check_branch
          %211 = sbr.rel (%p209) target = $region28
        $region27: #{block2_forward.1} parent=11 // pred_region
          %s213 = ssub.s32 256, 256
          %214 = vsyncadd [#allocation10], %s213
          %s215 = sshll.u32 [#allocation11], 4
          %s216 = int_to_ptr.vmem [resolvable:$true] %s215
          %221 = dma.hbm_to_vmem [thread:$0]  %s4, 256, %s216, [#allocation10], 128, 128, 8
        $region28: #{block2_forward.1} parent=11 // pred_fallthru
          _
      $region12: #{block2_forward.1} parent=5 // pred_fallthru
        _
      %p222 = scmp.lt.s32.totalorder %s19, 2
      // Predicated region
      $region29: #{block2_forward.1} parent=5 // pred_check
        %p223 = pneg %p222
      $region30: #{block2_forward.1} parent=5 // pred_check_branch
        %225 = sbr.rel (%p223) target = $region32
      $region31: #{block2_forward.1} parent=5 // pred_region
        // Predicated region
        $region33: #{block2_forward.1} parent=31 // pred_check
          %p226 = pneg %p39
        $region34: #{block2_forward.1} parent=31 // pred_check_branch
          %228 = sbr.rel (%p226) target = $region36
        $region35: #{block2_forward.1} parent=31 // pred_region
          %s229 = sand.u32 %s29, 1
          %s230 = scalar_lea.sflag [#allocation4], %s229
          %s231 = sand.u32 %s29, 1
          %s232 = smul.addr %s231, 16
          %s233 = scalar_lea.vmem [#allocation3], %s232
          %s235 = ssub.s32 256, 256
          %236 = vsyncadd %s230, %s235
          %s237 = smul.addr %s19, 2
          %s238 = smul.addr %s237, 128
          %s239 = scalar_lea.hbm %s0, %s238
          %s240 = sshll.u32 %s233, 4
          %s241 = int_to_ptr.vmem [resolvable:$true] %s240
          %246 = dma.hbm_to_vmem [thread:$0]  %s239, 256, %s241, %s230, 128, 128, 8
        $region36: #{block2_forward.1} parent=31 // pred_fallthru
          _
      $region32: #{block2_forward.1} parent=5 // pred_fallthru
        _
      %p247 = scmp.le.s32.totalorder 1, %s19
      %p248 = scmp.lt.s32.totalorder %s19, 3
      %p249 = pnand %p247, %p248
      %p250 = pneg %p249
      // Predicated region
      $region37: #{block2_forward.1} parent=5 // pred_check
        _
      $region38: #{block2_forward.1} parent=5 // pred_check_branch
        %252 = sbr.rel (%p249) target = $region40
      $region39: #{block2_forward.1} parent=5 // pred_region
        %s253 = ssub.s32 %s19, 1
        %s254 = sand.u32 %s32, 1
        %s255 = scalar_lea.sflag [#allocation4], %s254
        %s256 = sand.u32 %s32, 1
        %s257 = smul.addr %s256, 16
        %s258 = scalar_lea.vmem [#allocation3], %s257
        // Predicated region
        $region41: #{block2_forward.1} parent=39 // pred_check
          %p259 = pneg %p45
        $region42: #{block2_forward.1} parent=39 // pred_check_branch
          %261 = sbr.rel (%p259) target = $region44
        $region43: #{block2_forward.1} parent=39 // pred_region
          %262 = dma.done %s255, 256
        $region44: #{block2_forward.1} parent=39 // pred_fallthru
          _
        // Predicated region
        $region45: #{block2_forward.1} parent=39 // pred_check
          %p263 = pneg %p66
        $region46: #{block2_forward.1} parent=39 // pred_check_branch
          %265 = sbr.rel (%p263) target = $region48
        $region47: #{block2_forward.1} parent=39 // pred_region
          %266 = dma.done [#allocation7], 1024
        $region48: #{block2_forward.1} parent=39 // pred_fallthru
          _
        // Predicated region
        $region49: #{block2_forward.1} parent=39 // pred_check
          %p267 = pneg %p87
        $region50: #{block2_forward.1} parent=39 // pred_check_branch
          %269 = sbr.rel (%p267) target = $region52
        $region51: #{block2_forward.1} parent=39 // pred_region
          %270 = dma.done [#allocation7], 512
        $region52: #{block2_forward.1} parent=39 // pred_fallthru
          _
        // Predicated region
        $region53: #{block2_forward.1} parent=39 // pred_check
          %p271 = pneg %p108
        $region54: #{block2_forward.1} parent=39 // pred_check_branch
          %273 = sbr.rel (%p271) target = $region56
        $region55: #{block2_forward.1} parent=39 // pred_region
          %274 = dma.done [#allocation10], 256
        $region56: #{block2_forward.1} parent=39 // pred_fallthru
          _
        // Predicated region
        $region57: #{block2_forward.1} parent=39 // pred_check
          %p275 = pneg %p129
        $region58: #{block2_forward.1} parent=39 // pred_check_branch
          %277 = sbr.rel (%p275) target = $region60
        $region59: #{block2_forward.1} parent=39 // pred_region
          %278 = dma.done [#allocation10], 256
        $region60: #{block2_forward.1} parent=39 // pred_fallthru
          _
        %s279 = sand.u32 %s32, 1
        %s280 = scalar_lea.sflag [#allocation4], %s279
        %s281 = sand.u32 %s32, 1
        %s282 = smul.addr %s281, 16
        %s283 = scalar_lea.vmem [#allocation3], %s282
        %p284 = pneg %p45
        %p285 = pneg %p42
        %p286 = pneg %p66
        %p287 = pneg %p63
        %p288 = pneg %p87
        %p289 = pneg %p84
        %p290 = pneg %p108
        %p291 = pneg %p105
        %p292 = pneg %p129
        %p293 = pneg %p126
        %p294 = pneg %p155
        %p295 = pneg %p152
        %s296 = sand.u32 %s142, 1
        %s297 = scalar_lea.sflag [#allocation5], %s296
        %s298 = sand.u32 %s142, 1
        %s299 = smul.addr %s298, 16
        %s300 = scalar_lea.vmem [#allocation12], %s299
        %v301 = vld [vmem:[#allocation11] sm:$0xff]
        %v302 = vld [vmem:[#allocation11 + $0x8] sm:$0xff]
        %v303 = vld [vmem:[#allocation6] sm:$0xff]
        %v304 = vld [vmem:[#allocation6 + $0x8] sm:$0xff]
        %v305 = vld [vmem:[%s258] sm:$0xff]
        %v306 = vld [vmem:[%s258 + $0x8] sm:$0xff]
        %s307 = scalar_lea.vmem [#allocation6], 16
        %v308 = vld [vmem:[%s307] sm:$0xff]
        %v309 = vld [vmem:[%s307 + $0x8] sm:$0xff]
        %312 = vrot.lane.b32.xlu0 %v305, 112
        %v313 = vpop.permute.xlu0 %312
        %314 = vrot.lane.b32.xlu0 %v306, 112
        %v315 = vpop.permute.xlu0 %314
        %vm318 = vcmask 130048
        %v320 = vsel %vm318, %v308, 0
        %v323 = vsel %vm318, %v309, 0
        %325 = vmatprep.subr.mxu0 0.0
        %326 = vmatpush1.msra.mxu0 %v313
        %327 = vmatprep.subr.mxu0 0.0
        %328 = vmatpush1.msra.mxu0 %v315
        %329 = vmatprep.subr.mxu0 0.0
        %330 = vmatpush1.msra.mxu0 0.0
        %331 = vmatprep.subr.mxu0 0.0
        %332 = vmatpush1.msra.mxu0 0.0
        %333 = vmatprep.subr.mxu0 0.0
        %334 = vmatpush1.msra.mxu0 0.0
        %335 = vmatprep.subr.mxu0 0.0
        %336 = vmatpush1.msra.mxu0 0.0
        %337 = vmatprep.subr.mxu0 0.0
        %338 = vmatpush1.msra.mxu0 0.0
        %339 = vmatprep.subr.mxu0 0.0
        %340 = vmatpush1.msra.mxu0 0.0
        %341 = vmatprep.subr.mxu0 0.0
        %342 = vmatpush1.msra.mxu0 0.0
        %343 = vmatprep.subr.mxu0 0.0
        %344 = vmatpush1.msra.mxu0 0.0
        %345 = vmatprep.subr.mxu0 0.0
        %346 = vmatpush1.msra.mxu0 0.0
        %347 = vmatprep.subr.mxu0 0.0
        %348 = vmatpush1.msra.mxu0 0.0
        %349 = vmatprep.subr.mxu0 0.0
        %350 = vmatpush1.msra.mxu0 0.0
        %351 = vmatprep.subr.mxu0 0.0
        %352 = vmatpush1.msra.mxu0 0.0
        %353 = vmatprep.subr.mxu0 0.0
        %354 = vmatpush1.msra.mxu0 0.0
        %355 = vmatprep.subr.mxu0 0.0
        %356 = vmatpush1.msra.mxu0 0.0
        %357 = vmatprep.subr.mxu0 0.0
        %358 = vmatpush1.msra.mxu0 0.0
        %359 = vmatprep.subr.mxu0 0.0
        %360 = vmatpush1.msra.mxu0 0.0
        %361 = vmatprep.subr.mxu0 0.0
        %362 = vmatpush1.msra.mxu0 0.0
        %363 = vmatprep.subr.mxu0 0.0
        %364 = vmatpush1.msra.mxu0 0.0
        %365 = vmatprep.subr.mxu0 0.0
        %366 = vmatpush1.msra.mxu0 0.0
        %367 = vmatprep.subr.mxu0 0.0
        %368 = vmatpush1.msra.mxu0 0.0
        %369 = vmatprep.subr.mxu0 0.0
        %370 = vmatpush1.msra.mxu0 0.0
        %371 = vmatprep.subr.mxu0 0.0
        %372 = vmatpush1.msra.mxu0 0.0
        %373 = vmatprep.subr.mxu0 0.0
        %374 = vmatpush1.msra.mxu0 0.0
        %375 = vmatprep.subr.mxu0 0.0
        %376 = vmatpush1.msra.mxu0 0.0
        %377 = vmatprep.subr.mxu0 0.0
        %378 = vmatpush1.msra.mxu0 0.0
        %379 = vmatprep.subr.mxu0 0.0
        %380 = vmatpush1.msra.mxu0 0.0
        %381 = vmatprep.subr.mxu0 0.0
        %382 = vmatpush1.msra.mxu0 0.0
        %383 = vmatprep.subr.mxu0 0.0
        %384 = vmatpush1.msra.mxu0 0.0
        %385 = vmatprep.subr.mxu0 0.0
        %386 = vmatpush1.msra.mxu0 0.0
        %387 = vmatprep.subr.mxu0 0.0
        %388 = vmatpush1.msra.mxu0 0.0
        %389 = vmatprep.mubr.f32.mxu0 0.0
        %390 = vmatmul.mubr.f32.gmra.mrb[0].mxu0 %v320
        %v391 = vpop.f32.mrb[0].mxu0
        %v392 = vadd.f32 0.0, %v391
        %v393 = vpop.f32.mrb[0].mxu0
        %394 = vmatprep.mubr.f32.mxu0 0.0
        %395 = vmatmul.mubr.f32.gmra.mrb[0].mxu0 %v323
        %v396 = vpop.f32.mrb[0].mxu0
        %v397 = vadd.f32 0.0, %v396
        %v398 = vpop.f32.mrb[0].mxu0
        %399 = vdwg.mxu0
        %v401 = vsel %vm318, %v303, 0
        %v404 = vsel %vm318, %v304, 0
        %406 = vmatprep.subr.mxu0 0.0
        %407 = vmatpush1.msra.mxu0 %v305
        %408 = vmatprep.subr.mxu0 0.0
        %409 = vmatpush1.msra.mxu0 %v306
        %410 = vmatprep.subr.mxu0 0.0
        %411 = vmatpush1.msra.mxu0 0.0
        %412 = vmatprep.subr.mxu0 0.0
        %413 = vmatpush1.msra.mxu0 0.0
        %414 = vmatprep.subr.mxu0 0.0
        %415 = vmatpush1.msra.mxu0 0.0
        %416 = vmatprep.subr.mxu0 0.0
        %417 = vmatpush1.msra.mxu0 0.0
        %418 = vmatprep.subr.mxu0 0.0
        %419 = vmatpush1.msra.mxu0 0.0
        %420 = vmatprep.subr.mxu0 0.0
        %421 = vmatpush1.msra.mxu0 0.0
        %422 = vmatprep.subr.mxu0 0.0
        %423 = vmatpush1.msra.mxu0 0.0
        %424 = vmatprep.subr.mxu0 0.0
        %425 = vmatpush1.msra.mxu0 0.0
        %426 = vmatprep.subr.mxu0 0.0
        %427 = vmatpush1.msra.mxu0 0.0
        %428 = vmatprep.subr.mxu0 0.0
        %429 = vmatpush1.msra.mxu0 0.0
        %430 = vmatprep.subr.mxu0 0.0
        %431 = vmatpush1.msra.mxu0 0.0
        %432 = vmatprep.subr.mxu0 0.0
        %433 = vmatpush1.msra.mxu0 0.0
        %434 = vmatprep.subr.mxu0 0.0
        %435 = vmatpush1.msra.mxu0 0.0
        %436 = vmatprep.subr.mxu0 0.0
        %437 = vmatpush1.msra.mxu0 0.0
        %438 = vmatprep.subr.mxu0 0.0
        %439 = vmatpush1.msra.mxu0 0.0
        %440 = vmatprep.subr.mxu0 0.0
        %441 = vmatpush1.msra.mxu0 0.0
        %442 = vmatprep.subr.mxu0 0.0
        %443 = vmatpush1.msra.mxu0 0.0
        %444 = vmatprep.subr.mxu0 0.0
        %445 = vmatpush1.msra.mxu0 0.0
        %446 = vmatprep.subr.mxu0 0.0
        %447 = vmatpush1.msra.mxu0 0.0
        %448 = vmatprep.subr.mxu0 0.0
        %449 = vmatpush1.msra.mxu0 0.0
        %450 = vmatprep.subr.mxu0 0.0
        %451 = vmatpush1.msra.mxu0 0.0
        %452 = vmatprep.subr.mxu0 0.0
        %453 = vmatpush1.msra.mxu0 0.0
        %454 = vmatprep.subr.mxu0 0.0
        %455 = vmatpush1.msra.mxu0 0.0
        %456 = vmatprep.subr.mxu0 0.0
        %457 = vmatpush1.msra.mxu0 0.0
        %458 = vmatprep.subr.mxu0 0.0
        %459 = vmatpush1.msra.mxu0 0.0
        %460 = vmatprep.subr.mxu0 0.0
        %461 = vmatpush1.msra.mxu0 0.0
        %462 = vmatprep.subr.mxu0 0.0
        %463 = vmatpush1.msra.mxu0 0.0
        %464 = vmatprep.subr.mxu0 0.0
        %465 = vmatpush1.msra.mxu0 0.0
        %466 = vmatprep.subr.mxu0 0.0
        %467 = vmatpush1.msra.mxu0 0.0
        %468 = vmatprep.subr.mxu0 0.0
        %469 = vmatpush1.msra.mxu0 0.0
        %470 = vmatprep.mubr.f32.mxu0 0.0
        %471 = vmatmul.mubr.f32.gmra.mrb[0].mxu0 %v401
        %v472 = vpop.f32.mrb[0].mxu0
        %v473 = vadd.f32 %v392, %v472
        %v474 = vpop.f32.mrb[0].mxu0
        %475 = vmatprep.mubr.f32.mxu0 0.0
        %476 = vmatmul.mubr.f32.gmra.mrb[0].mxu0 %v404
        %v477 = vpop.f32.mrb[0].mxu0
        %v478 = vadd.f32 %v397, %v477
        %v479 = vpop.f32.mrb[0].mxu0
        %480 = vdwg.mxu0
        %s481 = scalar_lea.vmem [#allocation6], 32
        %v482 = vld [vmem:[%s481] sm:$0xff]
        %v483 = vld [vmem:[%s481 + $0x8] sm:$0xff]
        %484 = vrot.lane.b32.xlu0 %v305, 96
        %v485 = vpop.permute.xlu0 %484
        %486 = vrot.lane.b32.xlu0 %v306, 96
        %v487 = vpop.permute.xlu0 %486
        %v491 = vsel %vm318, %v482, 0
        %v494 = vsel %vm318, %v483, 0
        %496 = vmatprep.subr.mxu0 0.0
        %497 = vmatpush1.msra.mxu0 %v485
        %498 = vmatprep.subr.mxu0 0.0
        %499 = vmatpush1.msra.mxu0 %v487
        %500 = vmatprep.subr.mxu0 0.0
        %501 = vmatpush1.msra.mxu0 0.0
        %502 = vmatprep.subr.mxu0 0.0
        %503 = vmatpush1.msra.mxu0 0.0
        %504 = vmatprep.subr.mxu0 0.0
        %505 = vmatpush1.msra.mxu0 0.0
        %506 = vmatprep.subr.mxu0 0.0
        %507 = vmatpush1.msra.mxu0 0.0
        %508 = vmatprep.subr.mxu0 0.0
        %509 = vmatpush1.msra.mxu0 0.0
        %510 = vmatprep.subr.mxu0 0.0
        %511 = vmatpush1.msra.mxu0 0.0
        %512 = vmatprep.subr.mxu0 0.0
        %513 = vmatpush1.msra.mxu0 0.0
        %514 = vmatprep.subr.mxu0 0.0
        %515 = vmatpush1.msra.mxu0 0.0
        %516 = vmatprep.subr.mxu0 0.0
        %517 = vmatpush1.msra.mxu0 0.0
        %518 = vmatprep.subr.mxu0 0.0
        %519 = vmatpush1.msra.mxu0 0.0
        %520 = vmatprep.subr.mxu0 0.0
        %521 = vmatpush1.msra.mxu0 0.0
        %522 = vmatprep.subr.mxu0 0.0
        %523 = vmatpush1.msra.mxu0 0.0
        %524 = vmatprep.subr.mxu0 0.0
        %525 = vmatpush1.msra.mxu0 0.0
        %526 = vmatprep.subr.mxu0 0.0
        %527 = vmatpush1.msra.mxu0 0.0
        %528 = vmatprep.subr.mxu0 0.0
        %529 = vmatpush1.msra.mxu0 0.0
        %530 = vmatprep.subr.mxu0 0.0
        %531 = vmatpush1.msra.mxu0 0.0
        %532 = vmatprep.subr.mxu0 0.0
        %533 = vmatpush1.msra.mxu0 0.0
        %534 = vmatprep.subr.mxu0 0.0
        %535 = vmatpush1.msra.mxu0 0.0
        %536 = vmatprep.subr.mxu0 0.0
        %537 = vmatpush1.msra.mxu0 0.0
        %538 = vmatprep.subr.mxu0 0.0
        %539 = vmatpush1.msra.mxu0 0.0
        %540 = vmatprep.subr.mxu0 0.0
        %541 = vmatpush1.msra.mxu0 0.0
        %542 = vmatprep.subr.mxu0 0.0
        %543 = vmatpush1.msra.mxu0 0.0
        %544 = vmatprep.subr.mxu0 0.0
        %545 = vmatpush1.msra.mxu0 0.0
        %546 = vmatprep.subr.mxu0 0.0
        %547 = vmatpush1.msra.mxu0 0.0
        %548 = vmatprep.subr.mxu0 0.0
        %549 = vmatpush1.msra.mxu0 0.0
        %550 = vmatprep.subr.mxu0 0.0
        %551 = vmatpush1.msra.mxu0 0.0
        %552 = vmatprep.subr.mxu0 0.0
        %553 = vmatpush1.msra.mxu0 0.0
        %554 = vmatprep.subr.mxu0 0.0
        %555 = vmatpush1.msra.mxu0 0.0
        %556 = vmatprep.subr.mxu0 0.0
        %557 = vmatpush1.msra.mxu0 0.0
        %558 = vmatprep.subr.mxu0 0.0
        %559 = vmatpush1.msra.mxu0 0.0
        %560 = vmatprep.mubr.f32.mxu0 0.0
        %561 = vmatmul.mubr.f32.gmra.mrb[0].mxu0 %v491
        %v562 = vpop.f32.mrb[0].mxu0
        %v563 = vadd.f32 0.0, %v562
        %v564 = vpop.f32.mrb[0].mxu0
        %565 = vmatprep.mubr.f32.mxu0 0.0
        %566 = vmatmul.mubr.f32.gmra.mrb[0].mxu0 %v494
        %v567 = vpop.f32.mrb[0].mxu0
        %v568 = vadd.f32 0.0, %v567
        %v569 = vpop.f32.mrb[0].mxu0
        %570 = vdwg.mxu0
        %v571 = vadd.f32 %v473, %v563
        %v572 = vadd.f32 %v478, %v568
        %s573 = scalar_lea.vmem [#allocation6], 48
        %v574 = vld [vmem:[%s573] sm:$0xff]
        %v575 = vld [vmem:[%s573 + $0x8] sm:$0xff]
        %576 = vrot.lane.b32.xlu0 %v305, 80
        %v577 = vpop.permute.xlu0 %576
        %578 = vrot.lane.b32.xlu0 %v306, 80
        %v579 = vpop.permute.xlu0 %578
        %v583 = vsel %vm318, %v574, 0
        %v586 = vsel %vm318, %v575, 0
        %588 = vmatprep.subr.mxu0 0.0
        %589 = vmatpush1.msra.mxu0 %v577
        %590 = vmatprep.subr.mxu0 0.0
        %591 = vmatpush1.msra.mxu0 %v579
        %592 = vmatprep.subr.mxu0 0.0
        %593 = vmatpush1.msra.mxu0 0.0
        %594 = vmatprep.subr.mxu0 0.0
        %595 = vmatpush1.msra.mxu0 0.0
        %596 = vmatprep.subr.mxu0 0.0
        %597 = vmatpush1.msra.mxu0 0.0
        %598 = vmatprep.subr.mxu0 0.0
        %599 = vmatpush1.msra.mxu0 0.0
        %600 = vmatprep.subr.mxu0 0.0
        %601 = vmatpush1.msra.mxu0 0.0
        %602 = vmatprep.subr.mxu0 0.0
        %603 = vmatpush1.msra.mxu0 0.0
        %604 = vmatprep.subr.mxu0 0.0
        %605 = vmatpush1.msra.mxu0 0.0
        %606 = vmatprep.subr.mxu0 0.0
        %607 = vmatpush1.msra.mxu0 0.0
        %608 = vmatprep.subr.mxu0 0.0
        %609 = vmatpush1.msra.mxu0 0.0
        %610 = vmatprep.subr.mxu0 0.0
        %611 = vmatpush1.msra.mxu0 0.0
        %612 = vmatprep.subr.mxu0 0.0
        %613 = vmatpush1.msra.mxu0 0.0
        %614 = vmatprep.subr.mxu0 0.0
        %615 = vmatpush1.msra.mxu0 0.0
        %616 = vmatprep.subr.mxu0 0.0
        %617 = vmatpush1.msra.mxu0 0.0
        %618 = vmatprep.subr.mxu0 0.0
        %619 = vmatpush1.msra.mxu0 0.0
        %620 = vmatprep.subr.mxu0 0.0
        %621 = vmatpush1.msra.mxu0 0.0
        %622 = vmatprep.subr.mxu0 0.0
        %623 = vmatpush1.msra.mxu0 0.0
        %624 = vmatprep.subr.mxu0 0.0
        %625 = vmatpush1.msra.mxu0 0.0
        %626 = vmatprep.subr.mxu0 0.0
        %627 = vmatpush1.msra.mxu0 0.0
        %628 = vmatprep.subr.mxu0 0.0
        %629 = vmatpush1.msra.mxu0 0.0
        %630 = vmatprep.subr.mxu0 0.0
        %631 = vmatpush1.msra.mxu0 0.0
        %632 = vmatprep.subr.mxu0 0.0
        %633 = vmatpush1.msra.mxu0 0.0
        %634 = vmatprep.subr.mxu0 0.0
        %635 = vmatpush1.msra.mxu0 0.0
        %636 = vmatprep.subr.mxu0 0.0
        %637 = vmatpush1.msra.mxu0 0.0
        %638 = vmatprep.subr.mxu0 0.0
        %639 = vmatpush1.msra.mxu0 0.0
        %640 = vmatprep.subr.mxu0 0.0
        %641 = vmatpush1.msra.mxu0 0.0
        %642 = vmatprep.subr.mxu0 0.0
        %643 = vmatpush1.msra.mxu0 0.0
        %644 = vmatprep.subr.mxu0 0.0
        %645 = vmatpush1.msra.mxu0 0.0
        %646 = vmatprep.subr.mxu0 0.0
        %647 = vmatpush1.msra.mxu0 0.0
        %648 = vmatprep.subr.mxu0 0.0
        %649 = vmatpush1.msra.mxu0 0.0
        %650 = vmatprep.subr.mxu0 0.0
        %651 = vmatpush1.msra.mxu0 0.0
        %652 = vmatprep.mubr.f32.mxu0 0.0
        %653 = vmatmul.mubr.f32.gmra.mrb[0].mxu0 %v583
        %v654 = vpop.f32.mrb[0].mxu0
        %v655 = vadd.f32 0.0, %v654
        %v656 = vpop.f32.mrb[0].mxu0
        %657 = vmatprep.mubr.f32.mxu0 0.0
        %658 = vmatmul.mubr.f32.gmra.mrb[0].mxu0 %v586
        %v659 = vpop.f32.mrb[0].mxu0
        %v660 = vadd.f32 0.0, %v659
        %v661 = vpop.f32.mrb[0].mxu0
        %662 = vdwg.mxu0
        %v663 = vadd.f32 %v571, %v655
        %v664 = vadd.f32 %v572, %v660
        %666 = vset.pattern.permute.xlu0 0
        %667 = vperm.xlu0 %666, %v301
        %v668 = vpop.permute.xlu0 %667
        %671 = vset.pattern.permute.xlu0 0
        %672 = vperm.xlu0 %671, %v302
        %v673 = vpop.permute.xlu0 %672
        %v675 = vmul.f32 %v663, %v668
        %v676 = vmul.f32 %v664, %v673
        %677 = vset.pattern.permute.xlu0 1
        %678 = vperm.xlu0 %677, %v301
        %v679 = vpop.permute.xlu0 %678
        %681 = vset.pattern.permute.xlu0 1
        %682 = vperm.xlu0 %681, %v302
        %v683 = vpop.permute.xlu0 %682
        %v685 = vadd.f32 %v675, %v679
        %v686 = vadd.f32 %v676, %v683
        %v687 = vmax.f32 %v685, 0.0
        %v688 = vmax.f32 %v686, 0.0
        %vm689 = vcmask 523264
        %690 = vst.msk [vmem:[#allocation2] sm:$0xff] %vm689, 0.0
        %691 = vst.msk [vmem:[#allocation2 + $0x8] sm:$0xff] %vm689, 0.0
        %692 = vst.msk [vmem:[#allocation2 + $0x10] sm:$0xff] %vm689, 0.0
        %693 = vst.msk [vmem:[#allocation2 + $0x18] sm:$0xff] %vm689, 0.0
        %694 = vst.msk [vmem:[#allocation2 + $0x20] sm:$0xff] %vm689, 0.0
        %695 = vst.msk [vmem:[#allocation2 + $0x28] sm:$0xff] %vm689, 0.0
        %696 = vst.msk [vmem:[#allocation2 + $0x30] sm:$0xff] %vm689, 0.0
        %697 = vst.msk [vmem:[#allocation2 + $0x38] sm:$0xff] %vm689, 0.0
        %698 = vst.msk [vmem:[#allocation2 + $0x40] sm:$0xff] %vm689, 0.0
        %699 = vst.msk [vmem:[#allocation2 + $0x48] sm:$0xff] %vm689, 0.0
        %700 = vst.msk [vmem:[#allocation2 + $0x50] sm:$0xff] %vm689, 0.0
        %701 = vst.msk [vmem:[#allocation2 + $0x58] sm:$0xff] %vm689, 0.0
        %702 = vst.msk [vmem:[#allocation2 + $0x60] sm:$0xff] %vm689, 0.0
        %703 = vst.msk [vmem:[#allocation2 + $0x68] sm:$0xff] %vm689, 0.0
        %704 = vst.msk [vmem:[#allocation2 + $0x80] sm:$0xff] %vm689, 0.0
        %705 = vst.msk [vmem:[#allocation2 + $0x88] sm:$0xff] %vm689, 0.0
        %706 = vst.msk [vmem:[#allocation2 + $0x90] sm:$0xff] %vm689, 0.0
        %707 = vst.msk [vmem:[#allocation2 + $0x98] sm:$0xff] %vm689, 0.0
        %708 = vst.msk [vmem:[#allocation2 + $0xa0] sm:$0xff] %vm689, 0.0
        %709 = vst.msk [vmem:[#allocation2 + $0xa8] sm:$0xff] %vm689, 0.0
        %710 = vst.msk [vmem:[#allocation2 + $0xb0] sm:$0xff] %vm689, 0.0
        %711 = vst.msk [vmem:[#allocation2 + $0xb8] sm:$0xff] %vm689, 0.0
        %712 = vst.msk [vmem:[#allocation2 + $0xc0] sm:$0xff] %vm689, 0.0
        %713 = vst.msk [vmem:[#allocation2 + $0xc8] sm:$0xff] %vm689, 0.0
        %714 = vst.msk [vmem:[#allocation2 + $0xd0] sm:$0xff] %vm689, 0.0
        %715 = vst.msk [vmem:[#allocation2 + $0xd8] sm:$0xff] %vm689, 0.0
        %716 = vst.msk [vmem:[#allocation2 + $0xe0] sm:$0xff] %vm689, 0.0
        %717 = vst.msk [vmem:[#allocation2 + $0xe8] sm:$0xff] %vm689, 0.0
        %720 = vrot.lane.b32.xlu0 %v687, 48
        %v721 = vpop.permute.xlu0 %720
        %722 = vrot.lane.b32.xlu0 %v688, 48
        %v723 = vpop.permute.xlu0 %722
        %vm726 = vcmask 523648
        %727 = vst.msk [vmem:[#allocation2 + $0x40] sm:$0xff] %vm726, %v721
        %728 = vst.msk [vmem:[#allocation2 + $0x48] sm:$0xff] %vm726, %v723
        %729 = vrot.lane.b32.xlu0 %v687, 32
        %v730 = vpop.permute.xlu0 %729
        %731 = vrot.lane.b32.xlu0 %v688, 32
        %v732 = vpop.permute.xlu0 %731
        %vm735 = vcmask 523520
        %736 = vst.msk [vmem:[#allocation2 + $0x50] sm:$0xff] %vm735, %v730
        %737 = vst.msk [vmem:[#allocation2 + $0x58] sm:$0xff] %vm735, %v732
        %738 = vrot.lane.b32.xlu0 %v687, 16
        %v739 = vpop.permute.xlu0 %738
        %740 = vrot.lane.b32.xlu0 %v688, 16
        %v741 = vpop.permute.xlu0 %740
        %vm744 = vcmask 523392
        %745 = vst.msk [vmem:[#allocation2 + $0x60] sm:$0xff] %vm744, %v739
        %746 = vst.msk [vmem:[#allocation2 + $0x68] sm:$0xff] %vm744, %v741
        %747 = vst.msk [vmem:[#allocation2 + $0x70] sm:$0xff] %vm689, %v687
        %748 = vst.msk [vmem:[#allocation2 + $0x78] sm:$0xff] %vm689, %v688
        %749 = vrot.lane.b32.xlu0 %v687, 112
        %v750 = vpop.permute.xlu0 %749
        %751 = vrot.lane.b32.xlu0 %v688, 112
        %v752 = vpop.permute.xlu0 %751
        %vm755 = vcmask 392192
        %756 = vst.msk [vmem:[#allocation2 + $0x80] sm:$0xff] %vm755, %v750
        %757 = vst.msk [vmem:[#allocation2 + $0x88] sm:$0xff] %vm755, %v752
        %758 = vrot.lane.b32.xlu0 %v687, 96
        %v759 = vpop.permute.xlu0 %758
        %760 = vrot.lane.b32.xlu0 %v688, 96
        %v761 = vpop.permute.xlu0 %760
        %vm764 = vcmask 261120
        %765 = vst.msk [vmem:[#allocation2 + $0x90] sm:$0xff] %vm764, %v759
        %766 = vst.msk [vmem:[#allocation2 + $0x98] sm:$0xff] %vm764, %v761
        %767 = vrot.lane.b32.xlu0 %v687, 80
        %v768 = vpop.permute.xlu0 %767
        %769 = vrot.lane.b32.xlu0 %v688, 80
        %v770 = vpop.permute.xlu0 %769
        %773 = vst.msk [vmem:[#allocation2 + $0xa0] sm:$0xff] %vm318, %v768
        %774 = vst.msk [vmem:[#allocation2 + $0xa8] sm:$0xff] %vm318, %v770
        %v775 = vld [vmem:[#allocation8] sm:$0xff]
        %v776 = vld [vmem:[#allocation8 + $0x8] sm:$0xff]
        %v777 = vld [vmem:[#allocation8 + $0x10] sm:$0xff]
        %v778 = vld [vmem:[#allocation8 + $0x18] sm:$0xff]
        %v779 = vld [vmem:[#allocation2] sm:$0xff]
        %v780 = vld [vmem:[#allocation2 + $0x8] sm:$0xff]
        %v781 = vld [vmem:[#allocation2 + $0x10] sm:$0xff]
        %v782 = vld [vmem:[#allocation2 + $0x18] sm:$0xff]
        %v783 = vld [vmem:[#allocation2 + $0x20] sm:$0xff]
        %v784 = vld [vmem:[#allocation2 + $0x28] sm:$0xff]
        %v785 = vld [vmem:[#allocation2 + $0x30] sm:$0xff]
        %v786 = vld [vmem:[#allocation2 + $0x38] sm:$0xff]
        %v787 = vld [vmem:[#allocation2 + $0x40] sm:$0xff]
        %v788 = vld [vmem:[#allocation2 + $0x48] sm:$0xff]
        %v789 = vld [vmem:[#allocation2 + $0x50] sm:$0xff]
        %v790 = vld [vmem:[#allocation2 + $0x58] sm:$0xff]
        %v791 = vld [vmem:[#allocation2 + $0x60] sm:$0xff]
        %v792 = vld [vmem:[#allocation2 + $0x68] sm:$0xff]
        %v793 = vld [vmem:[#allocation2 + $0x70] sm:$0xff]
        %v794 = vld [vmem:[#allocation2 + $0x78] sm:$0xff]
        %v795 = vld [vmem:[#allocation2 + $0x80] sm:$0xff]
        %v796 = vld [vmem:[#allocation2 + $0x88] sm:$0xff]
        %v797 = vld [vmem:[#allocation2 + $0x90] sm:$0xff]
        %v798 = vld [vmem:[#allocation2 + $0x98] sm:$0xff]
        %v799 = vld [vmem:[#allocation2 + $0xa0] sm:$0xff]
        %v800 = vld [vmem:[#allocation2 + $0xa8] sm:$0xff]
        %v801 = vld [vmem:[#allocation2 + $0xb0] sm:$0xff]
        %v802 = vld [vmem:[#allocation2 + $0xb8] sm:$0xff]
        %v803 = vld [vmem:[#allocation2 + $0xc0] sm:$0xff]
        %v804 = vld [vmem:[#allocation2 + $0xc8] sm:$0xff]
        %v805 = vld [vmem:[#allocation2 + $0xd0] sm:$0xff]
        %v806 = vld [vmem:[#allocation2 + $0xd8] sm:$0xff]
        %v807 = vld [vmem:[#allocation2 + $0xe0] sm:$0xff]
        %v808 = vld [vmem:[#allocation2 + $0xe8] sm:$0xff]
        %v809 = vld [vmem:[%s258 + $0xc] sm:$0xf]
        %v810 = vld [vmem:[#allocation9] sm:$0xff]
        %v811 = vld [vmem:[#allocation9 + $0x8] sm:$0xff]
        %813 = vrot.lane.b32.xlu0 %v809, 112
        %v814 = vpop.permute.xlu0 %813
        %vm815 = vcmask 31744
        %v817 = vsel %vm815, %v810, 0
        %v820 = vsel %vm815, %v811, 0
        %vm822 = vcmask 1043456
        %v823 = vsel %vm822, %v814, 0
        %825 = vmatprep.subr.mxu0 0.0
        %826 = vmatpush1.msra.mxu0 %v823
        %827 = vmatprep.subr.mxu0 0.0
        %828 = vmatpush1.msra.mxu0 0.0
        %829 = vmatprep.subr.mxu0 0.0
        %830 = vmatpush1.msra.mxu0 0.0
        %831 = vmatprep.subr.mxu0 0.0
        %832 = vmatpush1.msra.mxu0 0.0
        %833 = vmatprep.subr.mxu0 0.0
        %834 = vmatpush1.msra.mxu0 0.0
        %835 = vmatprep.subr.mxu0 0.0
        %836 = vmatpush1.msra.mxu0 0.0
        %837 = vmatprep.subr.mxu0 0.0
        %838 = vmatpush1.msra.mxu0 0.0
        %839 = vmatprep.subr.mxu0 0.0
        %840 = vmatpush1.msra.mxu0 0.0
        %841 = vmatprep.subr.mxu0 0.0
        %842 = vmatpush1.msra.mxu0 0.0
        %843 = vmatprep.subr.mxu0 0.0
        %844 = vmatpush1.msra.mxu0 0.0
        %845 = vmatprep.subr.mxu0 0.0
        %846 = vmatpush1.msra.mxu0 0.0
        %847 = vmatprep.subr.mxu0 0.0
        %848 = vmatpush1.msra.mxu0 0.0
        %849 = vmatprep.subr.mxu0 0.0
        %850 = vmatpush1.msra.mxu0 0.0
        %851 = vmatprep.subr.mxu0 0.0
        %852 = vmatpush1.msra.mxu0 0.0
        %853 = vmatprep.subr.mxu0 0.0
        %854 = vmatpush1.msra.mxu0 0.0
        %855 = vmatprep.subr.mxu0 0.0
        %856 = vmatpush1.msra.mxu0 0.0
        %857 = vmatprep.subr.mxu0 0.0
        %858 = vmatpush1.msra.mxu0 0.0
        %859 = vmatprep.subr.mxu0 0.0
        %860 = vmatpush1.msra.mxu0 0.0
        %861 = vmatprep.subr.mxu0 0.0
        %862 = vmatpush1.msra.mxu0 0.0
        %863 = vmatprep.subr.mxu0 0.0
        %864 = vmatpush1.msra.mxu0 0.0
        %865 = vmatprep.subr.mxu0 0.0
        %866 = vmatpush1.msra.mxu0 0.0
        %867 = vmatprep.subr.mxu0 0.0
        %868 = vmatpush1.msra.mxu0 0.0
        %869 = vmatprep.subr.mxu0 0.0
        %870 = vmatpush1.msra.mxu0 0.0
        %871 = vmatprep.subr.mxu0 0.0
        %872 = vmatpush1.msra.mxu0 0.0
        %873 = vmatprep.subr.mxu0 0.0
        %874 = vmatpush1.msra.mxu0 0.0
        %875 = vmatprep.subr.mxu0 0.0
        %876 = vmatpush1.msra.mxu0 0.0
        %877 = vmatprep.subr.mxu0 0.0
        %878 = vmatpush1.msra.mxu0 0.0
        %879 = vmatprep.subr.mxu0 0.0
        %880 = vmatpush1.msra.mxu0 0.0
        %881 = vmatprep.subr.mxu0 0.0
        %882 = vmatpush1.msra.mxu0 0.0
        %883 = vmatprep.subr.mxu0 0.0
        %884 = vmatpush1.msra.mxu0 0.0
        %885 = vmatprep.subr.mxu0 0.0
        %886 = vmatpush1.msra.mxu0 0.0
        %887 = vmatprep.subr.mxu0 0.0
        %888 = vmatpush1.msra.mxu0 0.0
        %889 = vmatprep.mubr.f32.mxu0 0.0
        %890 = vmatmul.mubr.f32.gmra.mrb[0].mxu0 %v817
        %v891 = vpop.f32.mrb[0].mxu0
        %v892 = vadd.f32 0.0, %v891
        %v893 = vpop.f32.mrb[0].mxu0
        %894 = vmatprep.mubr.f32.mxu0 0.0
        %895 = vmatmul.mubr.f32.gmra.mrb[0].mxu0 %v820
        %v896 = vpop.f32.mrb[0].mxu0
        %v897 = vadd.f32 0.0, %v896
        %v898 = vpop.f32.mrb[0].mxu0
        %899 = vdwg.mxu0
        %900 = vset.pattern.permute.xlu0 2
        %901 = vperm.xlu0 %900, %v301
        %v902 = vpop.permute.xlu0 %901
        %904 = vset.pattern.permute.xlu0 2
        %905 = vperm.xlu0 %904, %v302
        %v906 = vpop.permute.xlu0 %905
        %v908 = vmul.f32 %v892, %v902
        %v909 = vmul.f32 %v897, %v906
        %910 = vset.pattern.permute.xlu0 3
        %911 = vperm.xlu0 %910, %v301
        %v912 = vpop.permute.xlu0 %911
        %914 = vset.pattern.permute.xlu0 3
        %915 = vperm.xlu0 %914, %v302
        %v916 = vpop.permute.xlu0 %915
        %v918 = vadd.f32 %v908, %v912
        %v919 = vadd.f32 %v909, %v916
        %vm920 = vcmask 916480
        %v922 = vsel %vm920, %v776, 0
        %v925 = vsel %vm920, %v778, 0
        %927 = vmatprep.subr.mxu0 0.0
        %928 = vmatpush1.msra.mxu0 %v779
        %929 = vmatprep.subr.mxu0 0.0
        %930 = vmatpush1.msra.mxu0 %v780
        %931 = vmatprep.subr.mxu0 0.0
        %932 = vmatpush1.msra.mxu0 %v781
        %933 = vmatprep.subr.mxu0 0.0
        %934 = vmatpush1.msra.mxu0 %v782
        %935 = vmatprep.subr.mxu0 0.0
        %936 = vmatpush1.msra.mxu0 %v783
        %937 = vmatprep.subr.mxu0 0.0
        %938 = vmatpush1.msra.mxu0 %v784
        %939 = vmatprep.subr.mxu0 0.0
        %940 = vmatpush1.msra.mxu0 %v785
        %941 = vmatprep.subr.mxu0 0.0
        %942 = vmatpush1.msra.mxu0 %v786
        %943 = vmatprep.subr.mxu0 0.0
        %944 = vmatpush1.msra.mxu0 %v787
        %945 = vmatprep.subr.mxu0 0.0
        %946 = vmatpush1.msra.mxu0 %v788
        %947 = vmatprep.subr.mxu0 0.0
        %948 = vmatpush1.msra.mxu0 %v789
        %949 = vmatprep.subr.mxu0 0.0
        %950 = vmatpush1.msra.mxu0 %v790
        %951 = vmatprep.subr.mxu0 0.0
        %952 = vmatpush1.msra.mxu0 %v791
        %953 = vmatprep.subr.mxu0 0.0
        %954 = vmatpush1.msra.mxu0 %v792
        %955 = vmatprep.subr.mxu0 0.0
        %956 = vmatpush1.msra.mxu0 %v793
        %957 = vmatprep.subr.mxu0 0.0
        %958 = vmatpush1.msra.mxu0 %v794
        %959 = vmatprep.subr.mxu0 0.0
        %960 = vmatpush1.msra.mxu0 %v795
        %961 = vmatprep.subr.mxu0 0.0
        %962 = vmatpush1.msra.mxu0 %v796
        %963 = vmatprep.subr.mxu0 0.0
        %964 = vmatpush1.msra.mxu0 %v797
        %965 = vmatprep.subr.mxu0 0.0
        %966 = vmatpush1.msra.mxu0 %v798
        %967 = vmatprep.subr.mxu0 0.0
        %968 = vmatpush1.msra.mxu0 %v799
        %969 = vmatprep.subr.mxu0 0.0
        %970 = vmatpush1.msra.mxu0 %v800
        %971 = vmatprep.subr.mxu0 0.0
        %972 = vmatpush1.msra.mxu0 %v801
        %973 = vmatprep.subr.mxu0 0.0
        %974 = vmatpush1.msra.mxu0 %v802
        %975 = vmatprep.subr.mxu0 0.0
        %976 = vmatpush1.msra.mxu0 %v803
        %977 = vmatprep.subr.mxu0 0.0
        %978 = vmatpush1.msra.mxu0 %v804
        %979 = vmatprep.subr.mxu0 0.0
        %980 = vmatpush1.msra.mxu0 %v805
        %981 = vmatprep.subr.mxu0 0.0
        %982 = vmatpush1.msra.mxu0 %v806
        %983 = vmatprep.subr.mxu0 0.0
        %984 = vmatpush1.msra.mxu0 %v807
        %985 = vmatprep.subr.mxu0 0.0
        %986 = vmatpush1.msra.mxu0 %v808
        %987 = vmatprep.subr.mxu0 0.0
        %988 = vmatpush1.msra.mxu0 0.0
        %989 = vmatprep.subr.mxu0 0.0
        %990 = vmatpush1.msra.mxu0 0.0
        %991 = vmatprep.mubr.f32.mxu0 %v922
        %992 = vmatmul.mubr.f32.gmra.mrb[0].mxu0 %v775
        %v993 = vpop.f32.mrb[0].mxu0
        %v994 = vadd.f32 %v918, %v993
        %v995 = vpop.f32.mrb[0].mxu0
        %996 = vmatprep.mubr.f32.mxu0 %v925
        %997 = vmatmul.mubr.f32.gmra.mrb[0].mxu0 %v777
        %v998 = vpop.f32.mrb[0].mxu0
        %v999 = vadd.f32 %v919, %v998
        %v1000 = vpop.f32.mrb[0].mxu0
        %1001 = vdwg.mxu0
        %1002 = vset.pattern.permute.xlu0 4
        %1003 = vperm.xlu0 %1002, %v301
        %v1004 = vpop.permute.xlu0 %1003
        %1006 = vset.pattern.permute.xlu0 4
        %1007 = vperm.xlu0 %1006, %v302
        %v1008 = vpop.permute.xlu0 %1007
        %v1010 = vmul.f32 %v994, %v1004
        %v1011 = vmul.f32 %v999, %v1008
        %1012 = vset.pattern.permute.xlu0 5
        %1013 = vperm.xlu0 %1012, %v301
        %v1014 = vpop.permute.xlu0 %1013
        %1016 = vset.pattern.permute.xlu0 5
        %1017 = vperm.xlu0 %1016, %v302
        %v1018 = vpop.permute.xlu0 %1017
        %v1020 = vadd.f32 %v1010, %v1014
        %v1021 = vadd.f32 %v1011, %v1018
        %v1022 = vmax.f32 %v1020, 0.0
        %v1023 = vmax.f32 %v1021, 0.0
        %1024 = vst.msk [vmem:[%s300] sm:$0xff] %vm689, %v1022
        %1025 = vst.msk [vmem:[%s300 + $0x8] sm:$0xff] %vm689, %v1023
        %s1026 = sand.u32 %s142, 1
        %s1027 = scalar_lea.sflag [#allocation5], %s1026
        %s1028 = sand.u32 %s142, 1
        %s1029 = smul.addr %s1028, 16
        %s1030 = scalar_lea.vmem [#allocation12], %s1029
        // Predicated region
        $region61: #{block2_forward.1} parent=39 // pred_check
          %p1031 = pneg %p152
        $region62: #{block2_forward.1} parent=39 // pred_check_branch
          %1033 = sbr.rel (%p1031) target = $region64
        $region63: #{block2_forward.1} parent=39 // pred_region
          %s1035 = ssub.s32 256, 256
          %1036 = vsyncadd %s1027, %s1035
          %s1037 = smul.addr %s24, 2
          %s1038 = smul.addr %s1037, 128
          %s1039 = scalar_lea.hbm %s5, %s1038
          %s1040 = sshll.u32 %s1030, 4
          %s1041 = int_to_ptr.vmem [resolvable:$true] %s1040
          %1046 = dma.vmem_to_hbm [thread:$0]  %s1041, 256, %s1039, %s1027, 128, 128, 8
        $region64: #{block2_forward.1} parent=39 // pred_fallthru
          _
      $region40: #{block2_forward.1} parent=5 // pred_fallthru
        _
      %p1047 = scmp.le.s32.totalorder 2, %s19
      // Predicated region
      $region65: #{block2_forward.1} parent=5 // pred_check
        %p1048 = pneg %p1047
      $region66: #{block2_forward.1} parent=5 // pred_check_branch
        %1050 = sbr.rel (%p1048) target = $region68
      $region67: #{block2_forward.1} parent=5 // pred_region
        %s1051 = ssub.s32 %s19, 2
        // Predicated region
        $region69: #{block2_forward.1} parent=67 // pred_check
          %p1052 = pneg %p158
        $region70: #{block2_forward.1} parent=67 // pred_check_branch
          %1054 = sbr.rel (%p1052) target = $region72
        $region71: #{block2_forward.1} parent=67 // pred_region
          %s1055 = sand.u32 %s143, 1
          %s1056 = scalar_lea.sflag [#allocation5], %s1055
          %s1057 = sand.u32 %s143, 1
          %s1058 = smul.addr %s1057, 16
          %s1059 = scalar_lea.vmem [#allocation12], %s1058
          %1060 = dma.done %s1056, 256
        $region72: #{block2_forward.1} parent=67 // pred_fallthru
          _
      $region68: #{block2_forward.1} parent=5 // pred_fallthru
        _
    $region6: #{block2_forward.1} parent=1 // loop_footer
      %s23 = sadd.s32 1, %s19
    $region7: #{block2_forward.1} parent=1 // loop_footer_branch
      %18 = sbr.rel target = $region3
    $region8: #{block2_forward.1} parent=1 // loop_exit
      _
    %1061 = vsyncpa [#allocation4], 1
    %s1062 = scalar_lea.sflag [#allocation4], 1
    %1063 = vsyncpa %s1062, 1
    %1064 = vsyncpa [#allocation7], 1
    %1065 = vsyncpa [#allocation10], 1
    %1066 = vsyncpa [#allocation5], 1
    %s1067 = scalar_lea.sflag [#allocation5], 1
    %1068 = vsyncpa %s1067, 1

</llo_original>
